<compile_context>
chip_gen: v7x
topology: tpu7x:2x2x1
jax: 0.10.0
libtpu: 0.0.40
codegen_flags: <defaults>
</compile_context>

<pallas_src>
import jax
import jax.numpy as jnp
from jax import lax
from jax.experimental import pallas as pl
from jax.experimental.pallas import tpu as pltpu


_SUB_ROWS = 512  # 512 rows x 128 lanes x 4B f32 = 256 KiB per in-kernel temporary


def _tpu_generation_params():
    """(rows_tile, vmem_limit_bytes) per TPU generation for this HBM-bound kernel."""
    kind = ""
    try:
        kind = jax.devices()[0].device_kind.lower()
    except Exception:
        pass
    if ("v5 lite" in kind) or ("v5e" in kind) or ("v5lite" in kind):
        # ~0.8 TB/s HBM: 2 MiB f32 blocks (8 MiB double-buffered inputs).
        rows_tile, vmem_limit = 4096, 32 << 20
    elif "v6" in kind:
        # ~1.4 TB/s HBM, 128 MiB VMEM: 4 MiB f32 blocks (16 MiB double-buffered).
        rows_tile, vmem_limit = 8192, 48 << 20
    elif ("v7" in kind) or ("tpu7" in kind) or ("7x" in kind):
        # 3.2 TB/s HBM but only 64 MiB VMEM/TC: 4 MiB blocks, cap well under 64 MiB.
        rows_tile, vmem_limit = 8192, 40 << 20
    else:
        # Unknown / older generation: conservative 1 MiB blocks, default scoped VMEM.
        rows_tile, vmem_limit = 2048, None
    if vmem_limit is not None:
        try:
            cap = pltpu.get_tpu_info().vmem_capacity_bytes
            vmem_limit = min(vmem_limit, int(cap) * 3 // 4)
        except Exception:
            pass
    return rows_tile, vmem_limit


def _make_mse_shard_kernel(rows, rows_tile, chunks_per_split, num_chunks_total,
                           num_splits, scale, sub_rows):
    """Kernel over one (device, row-split, row-chunk) grid point.

    x_ref, y_ref : (rows_tile, 128) native-dtype tiles of one shard
    o_ref        : (8, 128) f32, written once per (device, split) (lane-dense)
    acc_ref      : (8, 128) f32 VMEM scratch, elementwise partial sums
    """
    sub = min(sub_rows, rows_tile)
    n_full = rows_tile // sub
    rem = rows_tile - n_full * sub
    # Masking is needed whenever the (split x chunk) coverage overruns `rows`
    # (ragged last chunk, or fully out-of-range blocks created by the split).
    needs_mask = num_splits * chunks_per_split * rows_tile > rows

    def accum(x_ref, y_ref, acc_ref, r0, srows, row_base):
        x = x_ref[pl.ds(r0, srows), :].astype(jnp.float32)
        y = y_ref[pl.ds(r0, srows), :].astype(jnp.float32)
        d = x - y
        if needs_mask:
            rid = row_base + r0 + lax.broadcasted_iota(jnp.int32, (srows, 128), 0)
            d = jnp.where(rid < rows, d, 0.0)   # select before squaring: no NaN leak
        d2 = d * d
        if srows % 8 == 0:
            # Pure-VPU partial reduce: fold sublane groups with vector adds.
            acc_ref[...] += d2.reshape(srows // 8, 8, 128).sum(axis=0)
        else:
            # Rare tiny/remainder slice: broadcast sum/1024; finalize re-sums it.
            acc_ref[...] += jnp.broadcast_to(jnp.sum(d2) * (1.0 / 1024.0), (8, 128))

    def kernel(x_ref, y_ref, o_ref, acc_ref):
        h = pl.program_id(1)   # row-split index (parallel)
        k = pl.program_id(2)   # chunk index within this split (arbitrary)

        @pl.when(k == 0)
        def _init():
            acc_ref[...] = jnp.zeros_like(acc_ref)

        # Unclamped global chunk index -> absolute row offset of this block.
        row_base = (h * chunks_per_split + k) * rows_tile

        if n_full == 1:
            accum(x_ref, y_ref, acc_ref, 0, sub, row_base)
        else:
            def body(j, carry):
                r0 = pl.multiple_of(j * sub, sub)
                accum(x_ref, y_ref, acc_ref, r0, sub, row_base)
                return carry
            lax.fori_loop(0, n_full, body, 0, unroll=True)
        if rem:
            accum(x_ref, y_ref, acc_ref, n_full * sub, rem, row_base)

        @pl.when(k == chunks_per_split - 1)
        def _finalize():
            ssq = jnp.sum(acc_ref[...])
            # Normalization folded in: 1 / (shard_elems * num_devices).
            o_ref[...] = jnp.full(o_ref.shape, ssq * scale, dtype=o_ref.dtype)

    return kernel


def data_parallel_mse_criterion(pred, target, num_devices=2, *,
                                rows_tile=None, num_splits=None, sub_rows=None):
    """DataParallelCriterion(MSELoss()) forward.  pred/target: (B, C, H, W)."""
    assert pred.shape == target.shape
    B = pred.shape[0]
    assert B % num_devices == 0, "batch must split evenly across devices"

    # --- scatter along dim 0 (free reshape: no dtype cast, no copy) ---
    flat_p = pred.reshape(num_devices, -1)
    flat_t = target.reshape(num_devices, -1)
    n = flat_p.shape[1]                       # true elements per shard
    scale = 1.0 / (n * num_devices)

    # Lane-unaligned shard length: kernel handles the 128-aligned prefix, the
    # (<128-elem per shard) tail is folded in as a tiny XLA sum of squares.
    # (No jnp.pad of both full tensors.)
    n_main = (n // 128) * 128
    tail = n - n_main
    if tail:
        d_tail = (flat_p[:, n_main:].astype(jnp.float32)
                  - flat_t[:, n_main:].astype(jnp.float32))
        tail_loss = jnp.sum(d_tail * d_tail) * jnp.float32(scale)
    else:
        tail_loss = None
    if n_main == 0:
        return tail_loss if tail_loss is not None else jnp.float32(0.0)

    p_main = flat_p if tail == 0 else flat_p[:, :n_main]
    t_main = flat_t if tail == 0 else flat_t[:, :n_main]
    rows = n_main // 128
    x3 = p_main.reshape(num_devices, rows, 128)
    y3 = t_main.reshape(num_devices, rows, 128)

    # --- generation-dependent tiling (HBM-streaming kernel) ---
    gen_rows_tile, vmem_limit = _tpu_generation_params()
    if rows_tile is None:
        rows_tile = rows if rows <= gen_rows_tile else gen_rows_tile
    assert rows_tile <= rows and (rows_tile % 8 == 0 or rows_tile == rows)
    if sub_rows is None:
        sub_rows = _SUB_ROWS
    num_chunks_total = -(-rows // rows_tile)

    # v7x megacore: 'parallel' axes shard across the two TensorCores; add a
    # parallel row split when the device axis alone can't (num_devices odd/1).
    if num_splits is None:
        num_splits = 2 if (num_devices % 2 == 1 and num_chunks_total >= 2) else 1
    chunks_per_split = -(-num_chunks_total // num_splits)
    clamp = num_splits * chunks_per_split > num_chunks_total

    if clamp:
        def in_map(i, h, k):
            return (i, jnp.minimum(h * chunks_per_split + k, num_chunks_total - 1), 0)
    else:
        def in_map(i, h, k):
            return (i, h * chunks_per_split + k, 0)

    itemsize = jnp.dtype(pred.dtype).itemsize
    cost = pl.CostEstimate(
        flops=3 * num_devices * rows * 128,
        transcendentals=0,
        bytes_accessed=2 * num_devices * rows * 128 * itemsize
                       + num_devices * num_splits * 8 * 128 * 4,
    )

    compiler_kwargs = dict(dimension_semantics=("parallel", "parallel", "arbitrary"))
    if vmem_limit is not None:
        compiler_kwargs["vmem_limit_bytes"] = vmem_limit

    out = pl.pallas_call(
        _make_mse_shard_kernel(rows, rows_tile, chunks_per_split,
                               num_chunks_total, num_splits, scale, sub_rows),
        out_shape=jax.ShapeDtypeStruct((num_devices, num_splits, 8, 128),
                                       jnp.float32),
        grid=(num_devices, num_splits, chunks_per_split),
        in_specs=[
            pl.BlockSpec((None, rows_tile, 128), in_map),
            pl.BlockSpec((None, rows_tile, 128), in_map),
        ],
        out_specs=pl.BlockSpec((None, None, 8, 128), lambda i, h, k: (i, h, 0, 0)),
        scratch_shapes=[pltpu.VMEM((8, 128), jnp.float32)],
        compiler_params=pltpu.CompilerParams(**compiler_kwargs),
        cost_estimate=cost,
    )(x3, y3)

    # gather: Reduce.add(per-shard means) / num_devices  (scale already folded in)
    loss = jnp.sum(out[:, :, 0, 0])
    if tail_loss is not None:
        loss = loss + tail_loss
    return loss


if __name__ == "__main__":
    k0, k1, k2, k3 = jax.random.split(jax.random.PRNGKey(0), 4)

    def run_check(kp, shape, num_devices, dtype=jnp.float32, **kw):
        ka, kb = jax.random.split(kp)
        pred = jax.random.normal(ka, shape, dtype=jnp.float32).astype(dtype)
        target = jax.random.normal(kb, shape, dtype=jnp.float32).astype(dtype)
        loss = jax.block_until_ready(
            data_parallel_mse_criterion(pred, target, num_devices=num_devices, **kw))
        # equal shard sizes -> mean-of-shard-means == global MSE (same f32 math)
        d = pred.astype(jnp.float32) - target.astype(jnp.float32)
        ref = jnp.mean(d * d)
        assert jnp.allclose(loss, ref, rtol=1e-5, atol=1e-5), (shape, num_devices, kw,
                                                               loss, ref)

    # primary case: small NCHW batch scattered over 2 simulated devices
    run_check(k0, (2, 4, 16, 16), 2)
    # single-device case: parallel row split + ragged-chunk masking + OOB-block clamp
    run_check(k1, (2, 4, 16, 20), 1, rows_tile=8, num_splits=2)
    # multi-sub-slice fori_loop path with bf16 inputs (f32 in-kernel accumulate)
    run_check(k2, (2, 4, 16, 20), 1, dtype=jnp.bfloat16, rows_tile=16, sub_rows=8)
    # lane-unaligned shard length: kernel prefix + wrapper tail + fallback fold
    run_check(k3, (2, 4, 16, 17), 2, sub_rows=6)

    print("KERNEL_OK")
</pallas_src>

<mosaic_0001>
module attributes {stable_mosaic.version = 11 : i64} {
  func.func @kernel(%arg0: i32, %arg1: i32, %arg2: i32, %arg3: memref<1x8x128xf32, #tpu.memory_space<vmem>>, %arg4: memref<1x8x128xf32, #tpu.memory_space<vmem>>, %arg5: memref<1x1x8x128xf32, #tpu.memory_space<vmem>>, %arg6: memref<8x128xf32, #tpu.memory_space<vmem>>) attributes {dimension_semantics = [#tpu.dimension_semantics<parallel>, #tpu.dimension_semantics<parallel>, #tpu.dimension_semantics<arbitrary>], iteration_bounds = array<i64: 2, 1, 1>, scalar_prefetch = 0 : i64, scratch_operands = 1 : i64, tpu.core_type = #tpu.core_type<tc>, window_params = [{transform_indices = @transform_0, window_bounds = array<i64: 1, 8, 128>}, {transform_indices = @transform_1, window_bounds = array<i64: 1, 8, 128>}, {transform_indices = @transform_2, window_bounds = array<i64: 1, 1, 8, 128>}]} {
    %c0_i32 = arith.constant 0 : i32
    %0 = arith.cmpi eq, %arg2, %c0_i32 : i32
    %1 = arith.extui %0 : i1 to i32
    %c0_i32_0 = arith.constant 0 : i32
    %2 = arith.cmpi ne, %1, %c0_i32_0 : i32
    scf.if %2 {
      %cst_12 = arith.constant 0.000000e+00 : f32
      %17 = vector.broadcast %cst_12 : f32 to vector<8x128xf32>
      %c0_13 = arith.constant 0 : index
      %c0_14 = arith.constant 0 : index
      %18 = vector.load %arg6[%c0_13, %c0_14] : memref<8x128xf32, #tpu.memory_space<vmem>>, vector<8x128xf32>
      tpu.vector_store %arg6[%c0_13, %c0_14], %17 {strides = array<i32>} : memref<8x128xf32, #tpu.memory_space<vmem>>, vector<8x128xf32>,
    } else {
    }
    %c0 = arith.constant 0 : index
    %c0_1 = arith.constant 0 : index
    %c0_2 = arith.constant 0 : index
    %3 = vector.load %arg3[%c0, %c0_1, %c0_2] : memref<1x8x128xf32, #tpu.memory_space<vmem>>, vector<1x8x128xf32>
    %4 = vector.shape_cast %3 : vector<1x8x128xf32> to vector<8x128xf32>
    %c0_3 = arith.constant 0 : index
    %c0_4 = arith.constant 0 : index
    %c0_5 = arith.constant 0 : index
    %5 = vector.load %arg4[%c0_3, %c0_4, %c0_5] : memref<1x8x128xf32, #tpu.memory_space<vmem>>, vector<1x8x128xf32>
    %6 = vector.shape_cast %5 : vector<1x8x128xf32> to vector<8x128xf32>
    %7 = arith.subf %4, %6 : vector<8x128xf32>
    %8 = arith.mulf %7, %7 : vector<8x128xf32>
    %c0_6 = arith.constant 0 : index
    %c0_7 = arith.constant 0 : index
    %9 = vector.load %arg6[%c0_6, %c0_7] : memref<8x128xf32, #tpu.memory_space<vmem>>, vector<8x128xf32>
    %10 = vector.shape_cast %8 : vector<8x128xf32> to vector<1x8x128xf32>
    %cst = arith.constant dense<0.000000e+00> : vector<8x128xf32>
    %11 = vector.multi_reduction <add>, %10, %cst [0] : vector<1x8x128xf32> to vector<8x128xf32>
    %12 = arith.addf %9, %11 : vector<8x128xf32>
    %c0_8 = arith.constant 0 : index
    %c0_9 = arith.constant 0 : index
    %13 = vector.load %arg6[%c0_8, %c0_9] : memref<8x128xf32, #tpu.memory_space<vmem>>, vector<8x128xf32>
    tpu.vector_store %arg6[%c0_8, %c0_9], %12 {strides = array<i32>} : memref<8x128xf32, #tpu.memory_space<vmem>>, vector<8x128xf32>,
    %c0_i32_10 = arith.constant 0 : i32
    %14 = arith.cmpi eq, %arg2, %c0_i32_10 : i32
    %15 = arith.extui %14 : i1 to i32
    %c0_i32_11 = arith.constant 0 : i32
    %16 = arith.cmpi ne, %15, %c0_i32_11 : i32
    scf.if %16 {
      %c0_12 = arith.constant 0 : index
      %c0_13 = arith.constant 0 : index
      %17 = vector.load %arg6[%c0_12, %c0_13] : memref<8x128xf32, #tpu.memory_space<vmem>>, vector<8x128xf32>
      %18 = vector.shape_cast %17 : vector<8x128xf32> to vector<1x8x128xf32>
      %cst_14 = arith.constant dense<0.000000e+00> : vector<1xf32>
      %19 = vector.multi_reduction <add>, %18, %cst_14 [1, 2] : vector<1x8x128xf32> to vector<1xf32>
      %20 = vector.shape_cast %19 : vector<1xf32> to vector<1x1x1xf32>
      %21 = vector.extract %20[0, 0, 0] : f32 from vector<1x1x1xf32>
      %cst_15 = arith.constant 4.8828125E-4 : f32
      %22 = arith.mulf %21, %cst_15 : f32
      %23 = vector.broadcast %22 : f32 to vector<8x128xf32>
      %c0_16 = arith.constant 0 : index
      %c0_17 = arith.constant 0 : index
      %c0_18 = arith.constant 0 : index
      %c0_19 = arith.constant 0 : index
      %24 = vector.load %arg5[%c0_16, %c0_17, %c0_18, %c0_19] : memref<1x1x8x128xf32, #tpu.memory_space<vmem>>, vector<1x1x8x128xf32>
      %25 = vector.shape_cast %24 : vector<1x1x8x128xf32> to vector<8x128xf32>
      %26 = vector.shape_cast %23 : vector<8x128xf32> to vector<1x1x8x128xf32>
      tpu.vector_store %arg5[%c0_16, %c0_17, %c0_18, %c0_19], %26 {strides = array<i32>} : memref<1x1x8x128xf32, #tpu.memory_space<vmem>>, vector<1x1x8x128xf32>,
    } else {
    }
    return
  }
  func.func @transform_0(%arg0: i32, %arg1: i32, %arg2: i32) -> (i32, i32, i32) {
    %c1_i32 = arith.constant 1 : i32
    %0 = arith.muli %arg1, %c1_i32 : i32
    %1 = arith.addi %0, %arg2 : i32
    %c0_i32 = arith.constant 0 : i32
    %c0_i32_0 = arith.constant 0 : i32
    return %arg0, %1, %c0_i32 : i32, i32, i32
  }
  func.func @transform_1(%arg0: i32, %arg1: i32, %arg2: i32) -> (i32, i32, i32) {
    %c1_i32 = arith.constant 1 : i32
    %0 = arith.muli %arg1, %c1_i32 : i32
    %1 = arith.addi %0, %arg2 : i32
    %c0_i32 = arith.constant 0 : i32
    %c0_i32_0 = arith.constant 0 : i32
    return %arg0, %1, %c0_i32 : i32, i32, i32
  }
  func.func @transform_2(%arg0: i32, %arg1: i32, %arg2: i32) -> (i32, i32, i32, i32) {
    %c0_i32 = arith.constant 0 : i32
    %c0_i32_0 = arith.constant 0 : i32
    %c0_i32_1 = arith.constant 0 : i32
    return %arg0, %arg1, %c0_i32, %c0_i32_0 : i32, i32, i32, i32
  }
}

</mosaic_0001>

<llo_original>
// kernel: tpu_custom_call.1
$region0: #{tpu_custom_call.1}
  #allocation0 [shape = 'u32[]', space=smem, size = 0x4, offset = 0x4, fixed_abs, tag = 'smem constant byte address 0x4 - core index']
  #allocation1 [shape = 'u32[144,128]{1,0:T(1,128)}', space=vmem, size = 0x12000, scoped, tag = 'internal scratch']
  #allocation2 [shape = 'f32[8,128]{1,0:T(8,128)}', space=vmem, size = 0x1000, scoped, tag = 'scratch operand']
  %s0 = inlined_call_operand.hbm [shape: f32[2,8,128], index: 0, kind: input, shape index: {}]
  %s1 = inlined_call_operand.hbm [shape: f32[2,8,128], index: 1, kind: input, shape index: {}]
  %s2 = inlined_call_operand.hbm [shape: f32[2,1,8,128], index: 2, kind: output, shape index: {}]
  %s3 = sld [smem:[#allocation0]]
  $region57: #{tpu_custom_call.1} parent=0
    _
  %s5 = ssub.s32 1, %s3
  %s6 = scalar_select 0, %s5, %s3
  $region1: #{tpu_custom_call.1} parent=0
    #allocation3 [shape = 'u8[8192]{0}', space=vmem, size = 0x2000, scoped, tag = 'input window, operand 0']
    #allocation4 [shape = 's32[2]{0}', space=sflag, size = 0x8, scoped, tag = 'scoped memory for tpu_custom_call.1']
    #allocation5 [shape = 's32[2]{0}', space=sflag, size = 0x8, scoped, tag = 'scoped memory for tpu_custom_call.1']
    #allocation6 [shape = 'u8[8192]{0}', space=vmem, size = 0x2000, scoped, tag = 'input window, operand 1']
    #allocation7 [shape = 's32[2]{0}', space=sflag, size = 0x8, scoped, tag = 'scoped memory for tpu_custom_call.1']
    #allocation8 [shape = 'u8[8192]{0}', space=vmem, size = 0x2000, scoped, tag = 'output window, operand 0']
    %7 = vsyncpa [#allocation4], 0
    %s8 = scalar_lea.sflag [#allocation4], 1
    %9 = vsyncpa %s8, 0
    %10 = vsyncpa [#allocation7], 0
    %s11 = scalar_lea.sflag [#allocation7], 1
    %12 = vsyncpa %s11, 0
    %13 = vsyncpa [#allocation5], 0
    %s14 = scalar_lea.sflag [#allocation5], 1
    %15 = vsyncpa %s14, 0
    loop: start=0, step=1, limit=4
    $region2: #{tpu_custom_call.1} parent=1 // loop_pre_header
      _
    $region3: #{tpu_custom_call.1} parent=1 // loop_header
      %s17 = sphi 0, %s21
      %p18 = scmp.ge.s32.totalorder %s17, 4
      %s24 = sphi 0, %s43
      %s25 = sphi 0, %s39
      %s26 = sphi 0, %s35
      %s27 = sphi 0, %s24
      %s28 = sphi 0, %s25
      %s29 = sphi 0, %s26
      %s30 = sphi 0, %s27
      %s31 = sphi 0, %s28
      %s32 = sphi 0, %s29
      %s50 = sphi 0, %s52
      %s53 = sphi 0, %s50
      %s54 = sphi 0, %s53
      %s70 = sphi 0, %s54
      %s80 = sphi 0, %s82
      %s83 = sphi 0, %s80
      %s84 = sphi 0, %s83
      %s100 = sphi 0, %s84
      %s108 = sphi 0, %s110
      %s111 = sphi 0, %s108
      %s112 = sphi 0, %s111
      %s128 = sphi 0, %s112
    $region4: #{tpu_custom_call.1} parent=1 // loop_header_branch
      %20 = sbr.rel (%p18) target = $region8
    $region5: #{tpu_custom_call.1} parent=1 // loop_body
      %s22 = ssub.s32 %s17, 1
      %s23 = ssub.s32 %s17, 2
      %s33 = sadd.s32 1, %s26
      %p34 = scmp.ge.s32.totalorder %s33, 1
      %s35 = scalar_select %p34, 0, %s33
      %s36 = sadd.s32 1, %s25
      %s37 = scalar_select %p34, %s36, %s25
      %p38 = scmp.ge.s32.totalorder %s37, 1
      %s39 = scalar_select %p38, 0, %s37
      %s40 = sadd.s32 1, %s24
      %s41 = scalar_select %p38, %s40, %s24
      %p42 = scmp.ge.s32.totalorder %s41, 2
      %s43 = scalar_select %p42, 0, %s41
      %s44 = sadd.s32 %s25, %s26
      %s45 = sadd.s32 %s39, %s35
      %s46 = ssub.s32 %s24, %s43
      %s47 = ssub.s32 %s44, %s45
      %s48 = sor.u32 %s46, %s47
      %p49 = scmp.eq.s32.totalorder %s48, 0
      %s51 = sadd.s32 %s50, 1
      %s52 = scalar_select %p49, %s50, %s51
      %p55 = pneg %p49
      %p56 = scmp.eq.s32.totalorder %s17, 1
      %p57 = por %p55, %p56
      %p58 = scmp.ne.s32.totalorder %s50, %s53
      %p59 = scmp.eq.s32.totalorder %s17, 0
      %p60 = por %p58, %p59
      %p61 = scmp.ne.s32.totalorder %s50, %s53
      %p62 = scmp.eq.s32.totalorder %s22, 1
      %p63 = por %p61, %p62
      %p64 = scmp.ne.s32.totalorder %s53, %s54
      %p65 = scmp.eq.s32.totalorder %s22, 0
      %p66 = por %p64, %p65
      %p67 = scmp.ne.s32.totalorder %s53, %s54
      %p68 = scmp.eq.s32.totalorder %s23, 1
      %p69 = por %p67, %p68
      %p71 = scmp.ne.s32.totalorder %s54, %s70
      %p72 = scmp.eq.s32.totalorder %s23, 0
      %p73 = por %p71, %p72
      %s74 = sadd.s32 %s25, %s26
      %s75 = sadd.s32 %s39, %s35
      %s76 = ssub.s32 %s24, %s43
      %s77 = ssub.s32 %s74, %s75
      %s78 = sor.u32 %s76, %s77
      %p79 = scmp.eq.s32.totalorder %s78, 0
      %s81 = sadd.s32 %s80, 1
      %s82 = scalar_select %p79, %s80, %s81
      %p85 = pneg %p79
      %p86 = scmp.eq.s32.totalorder %s17, 1
      %p87 = por %p85, %p86
      %p88 = scmp.ne.s32.totalorder %s80, %s83
      %p89 = scmp.eq.s32.totalorder %s17, 0
      %p90 = por %p88, %p89
      %p91 = scmp.ne.s32.totalorder %s80, %s83
      %p92 = scmp.eq.s32.totalorder %s22, 1
      %p93 = por %p91, %p92
      %p94 = scmp.ne.s32.totalorder %s83, %s84
      %p95 = scmp.eq.s32.totalorder %s22, 0
      %p96 = por %p94, %p95
      %p97 = scmp.ne.s32.totalorder %s83, %s84
      %p98 = scmp.eq.s32.totalorder %s23, 1
      %p99 = por %p97, %p98
      %p101 = scmp.ne.s32.totalorder %s84, %s100
      %p102 = scmp.eq.s32.totalorder %s23, 0
      %p103 = por %p101, %p102
      %s104 = ssub.s32 %s24, %s43
      %s105 = ssub.s32 %s25, %s39
      %s106 = sor.u32 %s104, %s105
      %p107 = scmp.eq.s32.totalorder %s106, 0
      %s109 = sadd.s32 %s108, 1
      %s110 = scalar_select %p107, %s108, %s109
      %p113 = pneg %p107
      %p114 = scmp.eq.s32.totalorder %s17, 1
      %p115 = por %p113, %p114
      %p116 = scmp.ne.s32.totalorder %s108, %s111
      %p117 = scmp.eq.s32.totalorder %s17, 0
      %p118 = por %p116, %p117
      %p119 = scmp.ne.s32.totalorder %s108, %s111
      %p120 = scmp.eq.s32.totalorder %s22, 1
      %p121 = por %p119, %p120
      %p122 = scmp.ne.s32.totalorder %s111, %s112
      %p123 = scmp.eq.s32.totalorder %s22, 0
      %p124 = por %p122, %p123
      %p125 = scmp.ne.s32.totalorder %s111, %s112
      %p126 = scmp.eq.s32.totalorder %s23, 1
      %p127 = por %p125, %p126
      %p129 = scmp.ne.s32.totalorder %s112, %s128
      %p130 = scmp.eq.s32.totalorder %s23, 0
      %p131 = por %p129, %p130
      %p132 = scmp.le.s32.totalorder 1, %s17
      %p133 = scmp.lt.s32.totalorder %s17, 3
      %p134 = pnand %p132, %p133
      %p135 = pneg %p134
      // Predicated region
      $region9: #{tpu_custom_call.1} parent=5 // pred_check
        _
      $region10: #{tpu_custom_call.1} parent=5 // pred_check_branch
        %137 = sbr.rel (%p134) target = $region12
      $region11: #{tpu_custom_call.1} parent=5 // pred_region
        %s138 = ssub.s32 %s17, 1
      $region12: #{tpu_custom_call.1} parent=5 // pred_fallthru
        _
      %p139 = scmp.lt.s32.totalorder %s17, 2
      // Predicated region
      $region13: #{tpu_custom_call.1} parent=5 // pred_check
        %p140 = pneg %p139
      $region14: #{tpu_custom_call.1} parent=5 // pred_check_branch
        %142 = sbr.rel (%p140) target = $region16
      $region15: #{tpu_custom_call.1} parent=5 // pred_region
        // Predicated region
        $region17: #{tpu_custom_call.1} parent=15 // pred_check
          %p143 = pneg %p60
        $region18: #{tpu_custom_call.1} parent=15 // pred_check_branch
          %145 = sbr.rel (%p143) target = $region20
        $region19: #{tpu_custom_call.1} parent=15 // pred_region
          %s146 = sand.u32 %s50, 1
          %s147 = scalar_lea.sflag [#allocation4], %s146
          %s148 = sand.u32 %s50, 1
          %s149 = smul.addr %s148, 8
          %s150 = scalar_lea.vmem [#allocation3], %s149
          %s151 = sadd.s32 %s25, %s26
          %s153 = ssub.s32 128, 128
          %154 = vsyncadd %s147, %s153
          %s155 = sadd.s32 %s151, %s24
          %s156 = smul.addr %s155, 128
          %s157 = scalar_lea.hbm %s0, %s156
          %s159 = sshll.u32 %s150, 4
          %s160 = int_to_ptr.vmem [resolvable:$true] %s159
          %162 = dma.hbm_to_vmem [thread:$0]  %s157, 128, %s160, %s147
        $region20: #{tpu_custom_call.1} parent=15 // pred_fallthru
          _
        // Predicated region
        $region21: #{tpu_custom_call.1} parent=15 // pred_check
          %p163 = pneg %p90
        $region22: #{tpu_custom_call.1} parent=15 // pred_check_branch
          %165 = sbr.rel (%p163) target = $region24
        $region23: #{tpu_custom_call.1} parent=15 // pred_region
          %s166 = sand.u32 %s80, 1
          %s167 = scalar_lea.sflag [#allocation7], %s166
          %s168 = sand.u32 %s80, 1
          %s169 = smul.addr %s168, 8
          %s170 = scalar_lea.vmem [#allocation6], %s169
          %s171 = sadd.s32 %s25, %s26
          %s173 = ssub.s32 128, 128
          %174 = vsyncadd %s167, %s173
          %s175 = sadd.s32 %s171, %s24
          %s176 = smul.addr %s175, 128
          %s177 = scalar_lea.hbm %s1, %s176
          %s179 = sshll.u32 %s170, 4
          %s180 = int_to_ptr.vmem [resolvable:$true] %s179
          %182 = dma.hbm_to_vmem [thread:$0]  %s177, 128, %s180, %s167
        $region24: #{tpu_custom_call.1} parent=15 // pred_fallthru
          _
      $region16: #{tpu_custom_call.1} parent=5 // pred_fallthru
        _
      %p183 = scmp.le.s32.totalorder 1, %s17
      %p184 = scmp.lt.s32.totalorder %s17, 3
      %p185 = pnand %p183, %p184
      %p186 = pneg %p185
      // Predicated region
      $region25: #{tpu_custom_call.1} parent=5 // pred_check
        _
      $region26: #{tpu_custom_call.1} parent=5 // pred_check_branch
        %188 = sbr.rel (%p185) target = $region28
      $region27: #{tpu_custom_call.1} parent=5 // pred_region
        %s189 = ssub.s32 %s17, 1
        %s190 = sand.u32 %s53, 1
        %s191 = scalar_lea.sflag [#allocation4], %s190
        %s192 = sand.u32 %s53, 1
        %s193 = smul.addr %s192, 8
        %s194 = scalar_lea.vmem [#allocation3], %s193
        // Predicated region
        $region29: #{tpu_custom_call.1} parent=27 // pred_check
          %p195 = pneg %p66
        $region30: #{tpu_custom_call.1} parent=27 // pred_check_branch
          %197 = sbr.rel (%p195) target = $region32
        $region31: #{tpu_custom_call.1} parent=27 // pred_region
          %198 = dma.done %s191, 128
        $region32: #{tpu_custom_call.1} parent=27 // pred_fallthru
          _
        %s199 = sand.u32 %s83, 1
        %s200 = scalar_lea.sflag [#allocation7], %s199
        %s201 = sand.u32 %s83, 1
        %s202 = smul.addr %s201, 8
        %s203 = scalar_lea.vmem [#allocation6], %s202
        // Predicated region
        $region33: #{tpu_custom_call.1} parent=27 // pred_check
          %p204 = pneg %p96
        $region34: #{tpu_custom_call.1} parent=27 // pred_check_branch
          %206 = sbr.rel (%p204) target = $region36
        $region35: #{tpu_custom_call.1} parent=27 // pred_region
          %207 = dma.done %s200, 128
        $region36: #{tpu_custom_call.1} parent=27 // pred_fallthru
          _
        %s208 = sand.u32 %s53, 1
        %s209 = scalar_lea.sflag [#allocation4], %s208
        %s210 = sand.u32 %s53, 1
        %s211 = smul.addr %s210, 8
        %s212 = scalar_lea.vmem [#allocation3], %s211
        %p213 = pneg %p66
        %p214 = pneg %p63
        %s215 = sand.u32 %s83, 1
        %s216 = scalar_lea.sflag [#allocation7], %s215
        %s217 = sand.u32 %s83, 1
        %s218 = smul.addr %s217, 8
        %s219 = scalar_lea.vmem [#allocation6], %s218
        %p220 = pneg %p96
        %p221 = pneg %p93
        %p222 = pneg %p124
        %p223 = pneg %p121
        %s224 = sand.u32 %s111, 1
        %s225 = scalar_lea.sflag [#allocation5], %s224
        %s226 = sand.u32 %s111, 1
        %s227 = smul.addr %s226, 8
        %s228 = scalar_lea.vmem [#allocation8], %s227
        %s229 = sadd.s32 %s28, %s29
        %s230 = sadd.s32 %s28, %s29
        %p231 = scmp.eq.s32.totalorder %s29, 0
        // Predicated region
        $region37: #{tpu_custom_call.1} parent=27 // pred_check
          %p232 = pneg %p231
        $region38: #{tpu_custom_call.1} parent=27 // pred_check_branch
          %234 = sbr.rel (%p232) target = $region40
        $region39: #{tpu_custom_call.1} parent=27 // pred_region
          %235 = vst [vmem:[#allocation2] sm:$0xff] 0.0
        $region40: #{tpu_custom_call.1} parent=27 // pred_fallthru
          _
        %v236 = vld [vmem:[%s194] sm:$0xff]
        %v237 = vld [vmem:[%s203] sm:$0xff]
        %v238 = vsub.f32 %v236, %v237
        %v239 = vmul.f32 %v238, %v238
        %v240 = vld [vmem:[#allocation2] sm:$0xff]
        %v241 = vadd.f32 %v239, 0.0
        %v242 = vadd.f32 %v240, %v241
        %243 = vst [vmem:[#allocation2] sm:$0xff] %v242
        // Predicated region
        $region41: #{tpu_custom_call.1} parent=27 // pred_check
          %p244 = pneg %p231
        $region42: #{tpu_custom_call.1} parent=27 // pred_check_branch
          %246 = sbr.rel (%p244) target = $region44
        $region43: #{tpu_custom_call.1} parent=27 // pred_region
          %v247 = vld [vmem:[#allocation2] sm:$0xff]
          %248 = vadd.xlane.f32.xlu0 %v247
          %v249 = vpop.xlane.xlu0 %248
          %v250 = vrot.slane %v249, 4
          %v251 = vadd.f32 %v249, %v250
          %v252 = vrot.slane %v251, 2
          %v253 = vadd.f32 %v251, %v252
          %v254 = vrot.slane %v253, 1
          %v255 = vadd.f32 %v253, %v254
          %s256 = vtos %v255
          %s257 = smul.f32 %s256, 0.00048828125
          %v258 = vstv %s257
          %259 = vst [vmem:[%s228] sm:$0xff] %v258
        $region44: #{tpu_custom_call.1} parent=27 // pred_fallthru
          _
        %s260 = sand.u32 %s111, 1
        %s261 = scalar_lea.sflag [#allocation5], %s260
        %s262 = sand.u32 %s111, 1
        %s263 = smul.addr %s262, 8
        %s264 = scalar_lea.vmem [#allocation8], %s263
        // Predicated region
        $region45: #{tpu_custom_call.1} parent=27 // pred_check
          %p265 = pneg %p121
        $region46: #{tpu_custom_call.1} parent=27 // pred_check_branch
          %267 = sbr.rel (%p265) target = $region48
        $region47: #{tpu_custom_call.1} parent=27 // pred_region
          %s269 = ssub.s32 128, 128
          %270 = vsyncadd %s261, %s269
          %s271 = sadd.s32 %s28, %s27
          %s272 = smul.addr %s271, 128
          %s273 = scalar_lea.hbm %s2, %s272
          %s275 = sshll.u32 %s264, 4
          %s276 = int_to_ptr.vmem [resolvable:$true] %s275
          %278 = dma.vmem_to_hbm [thread:$0]  %s276, 128, %s273, %s261
        $region48: #{tpu_custom_call.1} parent=27 // pred_fallthru
          _
      $region28: #{tpu_custom_call.1} parent=5 // pred_fallthru
        _
      %p279 = scmp.le.s32.totalorder 2, %s17
      // Predicated region
      $region49: #{tpu_custom_call.1} parent=5 // pred_check
        %p280 = pneg %p279
      $region50: #{tpu_custom_call.1} parent=5 // pred_check_branch
        %282 = sbr.rel (%p280) target = $region52
      $region51: #{tpu_custom_call.1} parent=5 // pred_region
        %s283 = ssub.s32 %s17, 2
        // Predicated region
        $region53: #{tpu_custom_call.1} parent=51 // pred_check
          %p284 = pneg %p127
        $region54: #{tpu_custom_call.1} parent=51 // pred_check_branch
          %286 = sbr.rel (%p284) target = $region56
        $region55: #{tpu_custom_call.1} parent=51 // pred_region
          %s287 = sand.u32 %s112, 1
          %s288 = scalar_lea.sflag [#allocation5], %s287
          %s289 = sand.u32 %s112, 1
          %s290 = smul.addr %s289, 8
          %s291 = scalar_lea.vmem [#allocation8], %s290
          %292 = dma.done %s288, 128
        $region56: #{tpu_custom_call.1} parent=51 // pred_fallthru
          _
      $region52: #{tpu_custom_call.1} parent=5 // pred_fallthru
        _
    $region6: #{tpu_custom_call.1} parent=1 // loop_footer
      %s21 = sadd.s32 1, %s17
    $region7: #{tpu_custom_call.1} parent=1 // loop_footer_branch
      %16 = sbr.rel target = $region3
    $region8: #{tpu_custom_call.1} parent=1 // loop_exit
      _
    %293 = vsyncpa [#allocation4], 1
    %s294 = scalar_lea.sflag [#allocation4], 1
    %295 = vsyncpa %s294, 1
    %296 = vsyncpa [#allocation7], 1
    %s297 = scalar_lea.sflag [#allocation7], 1
    %298 = vsyncpa %s297, 1
    %299 = vsyncpa [#allocation5], 1
    %s300 = scalar_lea.sflag [#allocation5], 1
    %301 = vsyncpa %s300, 1

</llo_original>
